<compile_context>
chip_gen: v7x
topology: tpu7x:2x2x1
jax: 0.10.0
libtpu: 0.0.40
codegen_flags: <defaults>
</compile_context>

<pallas_src>
import jax
import jax.numpy as jnp
from jax.experimental import pallas as pl
from jax.experimental.pallas import tpu as pltpu

_SMALL_BYTES_PER_OPERAND = 64 * 1024   # below this: single block, no grid


def _unpack_kernel(x_ref, y0_ref, y1_ref, z0_ref, z1_ref, z2_ref,
                   o0_ref, o1_ref, o2_ref):
    # Single fused VPU pass.  The body is nowhere near binding (6 vld / 3 vst /
    # 5 VALU per vreg vs ~36 HBM bytes per element), so no micro-optimization.
    o0_ref[...] = x_ref[...] + z1_ref[...]
    o1_ref[...] = y0_ref[...] + y1_ref[...]
    o2_ref[...] = y1_ref[...] - z0_ref[...] + z1_ref[...] - z2_ref[...]


def _round_up(n, m):
    return -(-n // m) * m


def _tpu_vmem_capacity_bytes():
    """Best-effort VMEM capacity query; falls back to a v7x-safe value."""
    try:
        return int(pltpu.get_tpu_info().vmem_capacity_bytes)
    except Exception:
        pass
    try:
        kind = jax.devices()[0].device_kind.lower()
    except Exception:
        kind = ""
    if ("v5" in kind) or ("v6" in kind):
        return 128 << 20
    return 64 << 20   # conservative: v7x per-TensorCore VMEM


def model_forward(x, y, z):
    """JAX/Pallas equivalent of Model.forward(x, y, z).

    x: array, y: list of 2 arrays, z: tuple of 3 arrays, all same shape/dtype.
    Returns a 3-tuple of arrays with the same shape/dtype as the inputs.
    """
    y0, y1 = y
    z0, z1, z2 = z
    operands = (x, y0, y1, z0, z1, z2)
    for a in operands[1:]:
        assert a.shape == x.shape and a.dtype == x.dtype, \
            "all inputs must share shape and dtype"

    orig_shape = x.shape
    dtype = x.dtype
    total = int(x.size)
    itemsize = jnp.dtype(dtype).itemsize

    # ---- Lay out as a lane-dense 2D slab, avoiding extra HBM copies. --------
    lanes = None
    for cand in (512, 256, 128):
        if total % cand == 0:
            lanes = cand
            break

    if lanes is not None:
        # Free reshape (no pad, no slice on the way back).
        flat = [a.reshape(total // lanes, lanes) for a in operands]
        need_slice = False
        padded_total = total
    else:
        # Rare fallback: element count not a multiple of 128.  Pad only up to
        # the next multiple of 128.
        # TODO(synk): replace pad/slice with a masked tail block to avoid the
        # extra XLA copy passes for unaligned sizes.
        lanes = 128
        padded_total = _round_up(total, lanes)
        pad = padded_total - total
        flat = [jnp.pad(a.reshape(-1), (0, pad)).reshape(padded_total // lanes, lanes)
                for a in operands]
        need_slice = True

    rows = flat[0].shape[0]
    flat_shape = flat[0].shape

    # 5 elementwise ops/elem; 6 reads + 3 writes of the slab actually moved.
    cost = pl.CostEstimate(flops=5 * total, transcendentals=0,
                           bytes_accessed=9 * padded_total * itemsize)

    if total * itemsize <= _SMALL_BYTES_PER_OPERAND:
        # Tiny-input fast path: one full-array block, no grid.
        spec = pl.BlockSpec(flat_shape, lambda: (0, 0))
        outs = pl.pallas_call(
            _unpack_kernel,
            out_shape=tuple(jax.ShapeDtypeStruct(flat_shape, dtype)
                            for _ in range(3)),
            in_specs=[spec] * 6,
            out_specs=(spec, spec, spec),
            cost_estimate=cost,
        )(*flat)
    else:
        # Tiled, software-pipelined path over the row axis.
        vmem_cap = _tpu_vmem_capacity_bytes()
        if vmem_cap >= (100 << 20):
            # v5e / v6e: 128 MiB physical VMEM.  ~2 MiB per operand per block,
            # 9 operands double-buffered ~= 36 MiB.
            block_budget_bytes = 2 << 20
            vmem_limit = 64 << 20
        else:
            # v7x: 64 MiB per-TC VMEM.  Cap at ~1 MiB/operand (~18 MiB total
            # double-buffered) and leave Mosaic scratch headroom.
            block_budget_bytes = 1 << 20
            vmem_limit = 40 << 20

        max_block_rows = max(8, (block_budget_bytes // (lanes * itemsize)) // 8 * 8)
        # Guarantee >= 2 grid blocks so the "parallel" axis can be sharded
        # across both TensorCores on v7x even for mid-size inputs.
        block_rows = min(max_block_rows, _round_up(-(-rows // 2), 8))
        grid = pl.cdiv(rows, block_rows)

        spec = pl.BlockSpec((block_rows, lanes), lambda i: (i, 0))
        # NOTE: pipeline_mode=pl.Buffered(3) on inputs is a possible low-single-
        # digit % win on 128 MiB parts; intentionally not enabled (marginal).
        outs = pl.pallas_call(
            _unpack_kernel,
            out_shape=tuple(jax.ShapeDtypeStruct((rows, lanes), dtype)
                            for _ in range(3)),
            grid=(grid,),
            in_specs=[spec] * 6,
            out_specs=(spec, spec, spec),
            compiler_params=pltpu.CompilerParams(
                dimension_semantics=("parallel",),
                vmem_limit_bytes=vmem_limit,
            ),
            cost_estimate=cost,
        )(*flat)

    def _unflatten(o):
        if need_slice:
            return o.reshape(-1)[:total].reshape(orig_shape)
        return o.reshape(orig_shape)

    return tuple(_unflatten(o) for o in outs)


def _reference(x, y, z):
    return (x + z[1], y[0] + y[1], y[1] - z[0] + z[1] - z[2])


def _check(shape, seed):
    keys = jax.random.split(jax.random.PRNGKey(seed), 6)
    x = jax.random.normal(keys[0], shape, dtype=jnp.float32)
    y = [jax.random.normal(keys[1], shape, dtype=jnp.float32),
         jax.random.normal(keys[2], shape, dtype=jnp.float32)]
    z = (jax.random.normal(keys[3], shape, dtype=jnp.float32),
         jax.random.normal(keys[4], shape, dtype=jnp.float32),
         jax.random.normal(keys[5], shape, dtype=jnp.float32))

    out = jax.block_until_ready(model_forward(x, y, z))
    ref = _reference(x, y, z)
    for o, r in zip(out, ref):
        assert o.shape == r.shape and o.dtype == r.dtype
        assert jnp.allclose(o, r, atol=1e-6, rtol=1e-6)


if __name__ == "__main__":
    # Main case (matches the pnnx test scale): small path, zero-copy reshape.
    _check((2, 4, 16, 16), 0)
    # Non-128-aligned element count: minimal pad-to-128 fallback (small path).
    _check((3, 5, 33, 17), 1)
    # Mid-size: gridded path, forced >= 2 parallel blocks, partial last block.
    _check((2, 11, 32, 32), 2)
    # Larger aligned input: gridded path, even split, no padding at all.
    _check((8, 8, 64, 64), 3)
    print("KERNEL_OK")
</pallas_src>

<mosaic_0001>
module attributes {stable_mosaic.version = 11 : i64} {
  func.func @_unpack_kernel(%arg0: memref<4x512xf32, #tpu.memory_space<vmem>>, %arg1: memref<4x512xf32, #tpu.memory_space<vmem>>, %arg2: memref<4x512xf32, #tpu.memory_space<vmem>>, %arg3: memref<4x512xf32, #tpu.memory_space<vmem>>, %arg4: memref<4x512xf32, #tpu.memory_space<vmem>>, %arg5: memref<4x512xf32, #tpu.memory_space<vmem>>, %arg6: memref<4x512xf32, #tpu.memory_space<vmem>>, %arg7: memref<4x512xf32, #tpu.memory_space<vmem>>, %arg8: memref<4x512xf32, #tpu.memory_space<vmem>>) attributes {dimension_semantics = [], scalar_prefetch = 0 : i64, scratch_operands = 0 : i64, tpu.core_type = #tpu.core_type<tc>} {
    %c0 = arith.constant 0 : index
    %c0_0 = arith.constant 0 : index
    %0 = vector.load %arg0[%c0, %c0_0] : memref<4x512xf32, #tpu.memory_space<vmem>>, vector<4x512xf32>
    %c0_1 = arith.constant 0 : index
    %c0_2 = arith.constant 0 : index
    %1 = vector.load %arg4[%c0_1, %c0_2] : memref<4x512xf32, #tpu.memory_space<vmem>>, vector<4x512xf32>
    %2 = arith.addf %0, %1 : vector<4x512xf32>
    %c0_3 = arith.constant 0 : index
    %c0_4 = arith.constant 0 : index
    %3 = vector.load %arg6[%c0_3, %c0_4] : memref<4x512xf32, #tpu.memory_space<vmem>>, vector<4x512xf32>
    tpu.vector_store %arg6[%c0_3, %c0_4], %2 {strides = array<i32>} : memref<4x512xf32, #tpu.memory_space<vmem>>, vector<4x512xf32>,
    %c0_5 = arith.constant 0 : index
    %c0_6 = arith.constant 0 : index
    %4 = vector.load %arg1[%c0_5, %c0_6] : memref<4x512xf32, #tpu.memory_space<vmem>>, vector<4x512xf32>
    %c0_7 = arith.constant 0 : index
    %c0_8 = arith.constant 0 : index
    %5 = vector.load %arg2[%c0_7, %c0_8] : memref<4x512xf32, #tpu.memory_space<vmem>>, vector<4x512xf32>
    %6 = arith.addf %4, %5 : vector<4x512xf32>
    %c0_9 = arith.constant 0 : index
    %c0_10 = arith.constant 0 : index
    %7 = vector.load %arg7[%c0_9, %c0_10] : memref<4x512xf32, #tpu.memory_space<vmem>>, vector<4x512xf32>
    tpu.vector_store %arg7[%c0_9, %c0_10], %6 {strides = array<i32>} : memref<4x512xf32, #tpu.memory_space<vmem>>, vector<4x512xf32>,
    %c0_11 = arith.constant 0 : index
    %c0_12 = arith.constant 0 : index
    %8 = vector.load %arg2[%c0_11, %c0_12] : memref<4x512xf32, #tpu.memory_space<vmem>>, vector<4x512xf32>
    %c0_13 = arith.constant 0 : index
    %c0_14 = arith.constant 0 : index
    %9 = vector.load %arg3[%c0_13, %c0_14] : memref<4x512xf32, #tpu.memory_space<vmem>>, vector<4x512xf32>
    %10 = arith.subf %8, %9 : vector<4x512xf32>
    %c0_15 = arith.constant 0 : index
    %c0_16 = arith.constant 0 : index
    %11 = vector.load %arg4[%c0_15, %c0_16] : memref<4x512xf32, #tpu.memory_space<vmem>>, vector<4x512xf32>
    %12 = arith.addf %10, %11 : vector<4x512xf32>
    %c0_17 = arith.constant 0 : index
    %c0_18 = arith.constant 0 : index
    %13 = vector.load %arg5[%c0_17, %c0_18] : memref<4x512xf32, #tpu.memory_space<vmem>>, vector<4x512xf32>
    %14 = arith.subf %12, %13 : vector<4x512xf32>
    %c0_19 = arith.constant 0 : index
    %c0_20 = arith.constant 0 : index
    %15 = vector.load %arg8[%c0_19, %c0_20] : memref<4x512xf32, #tpu.memory_space<vmem>>, vector<4x512xf32>
    tpu.vector_store %arg8[%c0_19, %c0_20], %14 {strides = array<i32>} : memref<4x512xf32, #tpu.memory_space<vmem>>, vector<4x512xf32>,
    return
  }
}

</mosaic_0001>

<llo_original>
// kernel: tpu_custom_call.1
$region0: #{tpu_custom_call.1}
  #allocation0 [shape = 'u32[]', space=smem, size = 0x4, offset = 0x4, fixed_abs, tag = 'smem constant byte address 0x4 - core index']
  #allocation1 [shape = 'u32[144,128]{1,0:T(1,128)}', space=vmem, size = 0x12000, scoped, tag = 'internal scratch']
  %s0 = inlined_call_operand.hbm [shape: f32[4,512], index: 0, kind: input, shape index: {}]
  %s1 = inlined_call_operand.hbm [shape: f32[4,512], index: 1, kind: input, shape index: {}]
  %s2 = inlined_call_operand.hbm [shape: f32[4,512], index: 2, kind: input, shape index: {}]
  %s3 = inlined_call_operand.hbm [shape: f32[4,512], index: 3, kind: input, shape index: {}]
  %s4 = inlined_call_operand.hbm [shape: f32[4,512], index: 4, kind: input, shape index: {}]
  %s5 = inlined_call_operand.vmem [shape: f32[4,512], index: 5, kind: input, shape index: {}]
  %s6 = inlined_call_operand.hbm [shape: f32[4,512], index: 6, kind: output, shape index: {0}]
  %s7 = inlined_call_operand.hbm [shape: f32[4,512], index: 7, kind: output, shape index: {1}]
  %s8 = inlined_call_operand.hbm [shape: f32[4,512], index: 8, kind: output, shape index: {2}]
  %9 = xla_tuple %s6, %s7, %s8
  %s10 = sld [smem:[#allocation0]]
  $region70: #{tpu_custom_call.1} parent=0
    _
  %s12 = ssub.s32 1, %s10
  %s13 = scalar_select 0, %s12, %s10
  $region1: #{tpu_custom_call.1} parent=0
    #allocation2 [shape = 'u8[8192]{0}', space=vmem, size = 0x2000, scoped, tag = 'input window, operand 0, single buffered']
    #allocation3 [shape = 's32[1]{0}', space=sflag, size = 0x4, scoped, tag = 'scoped memory for tpu_custom_call.1']
    #allocation4 [shape = 's32[1]{0}', space=sflag, size = 0x4, scoped, tag = 'scoped memory for tpu_custom_call.1']
    #allocation5 [shape = 'u8[8192]{0}', space=vmem, size = 0x2000, scoped, tag = 'input window, operand 1, single buffered']
    #allocation6 [shape = 's32[1]{0}', space=sflag, size = 0x4, scoped, tag = 'scoped memory for tpu_custom_call.1']
    #allocation7 [shape = 'u8[8192]{0}', space=vmem, size = 0x2000, scoped, tag = 'input window, operand 2, single buffered']
    #allocation8 [shape = 'u8[8192]{0}', space=vmem, size = 0x2000, scoped, tag = 'input window, operand 3, single buffered']
    #allocation9 [shape = 's32[1]{0}', space=sflag, size = 0x4, scoped, tag = 'scoped memory for tpu_custom_call.1']
    #allocation10 [shape = 'u8[8192]{0}', space=vmem, size = 0x2000, scoped, tag = 'input window, operand 4, single buffered']
    #allocation11 [shape = 'u8[8192]{0}', space=vmem, size = 0x2000, scoped, tag = 'output window, operand 0, single buffered']
    #allocation12 [shape = 'u8[8192]{0}', space=vmem, size = 0x2000, scoped, tag = 'output window, operand 1, single buffered']
    #allocation13 [shape = 's32[1]{0}', space=sflag, size = 0x4, scoped, tag = 'scoped memory for tpu_custom_call.1']
    #allocation14 [shape = 'u8[8192]{0}', space=vmem, size = 0x2000, scoped, tag = 'output window, operand 2, single buffered']
    %14 = vsyncpa [#allocation3], 0
    %15 = vsyncpa [#allocation6], 0
    %16 = vsyncpa [#allocation9], 0
    %17 = vsyncpa [#allocation4], 0
    %18 = vsyncpa [#allocation13], 0
    // Predicated region
    $region2: #{tpu_custom_call.1} parent=1 // pred_check
      _
    $region3: #{tpu_custom_call.1} parent=1 // pred_check_branch
      %20 = sbr.rel (0) target = $region5
    $region4: #{tpu_custom_call.1} parent=1 // pred_region
      %s22 = ssub.s32 256, 256
      %23 = vsyncadd [#allocation3], %s22
      %s25 = sshll.u32 [#allocation2], 4
      %s26 = int_to_ptr.vmem [resolvable:$true] %s25
      %28 = dma.hbm_to_vmem [thread:$0]  %s0, 256, %s26, [#allocation3]
    $region5: #{tpu_custom_call.1} parent=1 // pred_fallthru
      _
    // Predicated region
    $region6: #{tpu_custom_call.1} parent=1 // pred_check
      _
    $region7: #{tpu_custom_call.1} parent=1 // pred_check_branch
      %30 = sbr.rel (0) target = $region9
    $region8: #{tpu_custom_call.1} parent=1 // pred_region
      %s32 = ssub.s32 256, 256
      %33 = vsyncadd [#allocation6], %s32
      %s35 = sshll.u32 [#allocation5], 4
      %s36 = int_to_ptr.vmem [resolvable:$true] %s35
      %38 = dma.hbm_to_vmem [thread:$0]  %s1, 256, %s36, [#allocation6]
    $region9: #{tpu_custom_call.1} parent=1 // pred_fallthru
      _
    // Predicated region
    $region10: #{tpu_custom_call.1} parent=1 // pred_check
      _
    $region11: #{tpu_custom_call.1} parent=1 // pred_check_branch
      %40 = sbr.rel (0) target = $region13
    $region12: #{tpu_custom_call.1} parent=1 // pred_region
      %s42 = ssub.s32 256, 256
      %43 = vsyncadd [#allocation6], %s42
      %s45 = sshll.u32 [#allocation7], 4
      %s46 = int_to_ptr.vmem [resolvable:$true] %s45
      %48 = dma.hbm_to_vmem [thread:$0]  %s2, 256, %s46, [#allocation6]
    $region13: #{tpu_custom_call.1} parent=1 // pred_fallthru
      _
    // Predicated region
    $region14: #{tpu_custom_call.1} parent=1 // pred_check
      _
    $region15: #{tpu_custom_call.1} parent=1 // pred_check_branch
      %50 = sbr.rel (0) target = $region17
    $region16: #{tpu_custom_call.1} parent=1 // pred_region
      %s52 = ssub.s32 256, 256
      %53 = vsyncadd [#allocation9], %s52
      %s55 = sshll.u32 [#allocation8], 4
      %s56 = int_to_ptr.vmem [resolvable:$true] %s55
      %58 = dma.hbm_to_vmem [thread:$0]  %s3, 256, %s56, [#allocation9]
    $region17: #{tpu_custom_call.1} parent=1 // pred_fallthru
      _
    // Predicated region
    $region18: #{tpu_custom_call.1} parent=1 // pred_check
      _
    $region19: #{tpu_custom_call.1} parent=1 // pred_check_branch
      %60 = sbr.rel (0) target = $region21
    $region20: #{tpu_custom_call.1} parent=1 // pred_region
      %s62 = ssub.s32 256, 256
      %63 = vsyncadd [#allocation9], %s62
      %s65 = sshll.u32 [#allocation10], 4
      %s66 = int_to_ptr.vmem [resolvable:$true] %s65
      %68 = dma.hbm_to_vmem [thread:$0]  %s4, 256, %s66, [#allocation9]
    $region21: #{tpu_custom_call.1} parent=1 // pred_fallthru
      _
    // Predicated region
    $region22: #{tpu_custom_call.1} parent=1 // pred_check
      _
    $region23: #{tpu_custom_call.1} parent=1 // pred_check_branch
      %70 = sbr.rel (0) target = $region25
    $region24: #{tpu_custom_call.1} parent=1 // pred_region
      _
    $region25: #{tpu_custom_call.1} parent=1 // pred_fallthru
      _
    // Predicated region
    $region26: #{tpu_custom_call.1} parent=1 // pred_check
      _
    $region27: #{tpu_custom_call.1} parent=1 // pred_check_branch
      %72 = sbr.rel (0) target = $region29
    $region28: #{tpu_custom_call.1} parent=1 // pred_region
      %73 = dma.done [#allocation3], 256
    $region29: #{tpu_custom_call.1} parent=1 // pred_fallthru
      _
    // Predicated region
    $region30: #{tpu_custom_call.1} parent=1 // pred_check
      _
    $region31: #{tpu_custom_call.1} parent=1 // pred_check_branch
      %75 = sbr.rel (0) target = $region33
    $region32: #{tpu_custom_call.1} parent=1 // pred_region
      %76 = dma.done [#allocation6], 256
    $region33: #{tpu_custom_call.1} parent=1 // pred_fallthru
      _
    // Predicated region
    $region34: #{tpu_custom_call.1} parent=1 // pred_check
      _
    $region35: #{tpu_custom_call.1} parent=1 // pred_check_branch
      %78 = sbr.rel (0) target = $region37
    $region36: #{tpu_custom_call.1} parent=1 // pred_region
      %79 = dma.done [#allocation6], 256
    $region37: #{tpu_custom_call.1} parent=1 // pred_fallthru
      _
    // Predicated region
    $region38: #{tpu_custom_call.1} parent=1 // pred_check
      _
    $region39: #{tpu_custom_call.1} parent=1 // pred_check_branch
      %81 = sbr.rel (0) target = $region41
    $region40: #{tpu_custom_call.1} parent=1 // pred_region
      %82 = dma.done [#allocation9], 256
    $region41: #{tpu_custom_call.1} parent=1 // pred_fallthru
      _
    // Predicated region
    $region42: #{tpu_custom_call.1} parent=1 // pred_check
      _
    $region43: #{tpu_custom_call.1} parent=1 // pred_check_branch
      %84 = sbr.rel (0) target = $region45
    $region44: #{tpu_custom_call.1} parent=1 // pred_region
      %85 = dma.done [#allocation9], 256
    $region45: #{tpu_custom_call.1} parent=1 // pred_fallthru
      _
    %v86 = vld [vmem:[#allocation2] sm:$0xff]
    %v87 = vld [vmem:[#allocation2 + $0x8] sm:$0xff]
    %v88 = vld [vmem:[#allocation10] sm:$0xff]
    %v89 = vld [vmem:[#allocation10 + $0x8] sm:$0xff]
    %v90 = vadd.f32 %v86, %v88
    %v91 = vadd.f32 %v87, %v89
    %92 = vst [vmem:[#allocation11] sm:$0xff] %v90
    %93 = vst [vmem:[#allocation11 + $0x8] sm:$0xff] %v91
    %v94 = vld [vmem:[#allocation5] sm:$0xff]
    %v95 = vld [vmem:[#allocation5 + $0x8] sm:$0xff]
    %v96 = vld [vmem:[#allocation7] sm:$0xff]
    %v97 = vld [vmem:[#allocation7 + $0x8] sm:$0xff]
    %v98 = vadd.f32 %v94, %v96
    %v99 = vadd.f32 %v95, %v97
    %100 = vst [vmem:[#allocation12] sm:$0xff] %v98
    %101 = vst [vmem:[#allocation12 + $0x8] sm:$0xff] %v99
    %v102 = vld [vmem:[#allocation7] sm:$0xff]
    %v103 = vld [vmem:[#allocation7 + $0x8] sm:$0xff]
    %v104 = vld [vmem:[#allocation8] sm:$0xff]
    %v105 = vld [vmem:[#allocation8 + $0x8] sm:$0xff]
    %v106 = vsub.f32 %v102, %v104
    %v107 = vsub.f32 %v103, %v105
    %v108 = vld [vmem:[#allocation10] sm:$0xff]
    %v109 = vld [vmem:[#allocation10 + $0x8] sm:$0xff]
    %v110 = vadd.f32 %v106, %v108
    %v111 = vadd.f32 %v107, %v109
    %v112 = vld [vmem:[%s5] sm:$0xff]
    %v113 = vld [vmem:[%s5 + $0x8] sm:$0xff]
    %v114 = vsub.f32 %v110, %v112
    %v115 = vsub.f32 %v111, %v113
    %116 = vst [vmem:[#allocation14] sm:$0xff] %v114
    %117 = vst [vmem:[#allocation14 + $0x8] sm:$0xff] %v115
    // Predicated region
    $region46: #{tpu_custom_call.1} parent=1 // pred_check
      _
    $region47: #{tpu_custom_call.1} parent=1 // pred_check_branch
      %119 = sbr.rel (0) target = $region49
    $region48: #{tpu_custom_call.1} parent=1 // pred_region
      %s121 = ssub.s32 256, 256
      %122 = vsyncadd [#allocation4], %s121
      %s124 = sshll.u32 [#allocation11], 4
      %s125 = int_to_ptr.vmem [resolvable:$true] %s124
      %127 = dma.vmem_to_hbm [thread:$0]  %s125, 256, %s6, [#allocation4]
    $region49: #{tpu_custom_call.1} parent=1 // pred_fallthru
      _
    // Predicated region
    $region50: #{tpu_custom_call.1} parent=1 // pred_check
      _
    $region51: #{tpu_custom_call.1} parent=1 // pred_check_branch
      %129 = sbr.rel (0) target = $region53
    $region52: #{tpu_custom_call.1} parent=1 // pred_region
      %s131 = ssub.s32 256, 256
      %132 = vsyncadd [#allocation13], %s131
      %s134 = sshll.u32 [#allocation12], 4
      %s135 = int_to_ptr.vmem [resolvable:$true] %s134
      %137 = dma.vmem_to_hbm [thread:$0]  %s135, 256, %s7, [#allocation13]
    $region53: #{tpu_custom_call.1} parent=1 // pred_fallthru
      _
    // Predicated region
    $region54: #{tpu_custom_call.1} parent=1 // pred_check
      _
    $region55: #{tpu_custom_call.1} parent=1 // pred_check_branch
      %139 = sbr.rel (0) target = $region57
    $region56: #{tpu_custom_call.1} parent=1 // pred_region
      %s141 = ssub.s32 256, 256
      %142 = vsyncadd [#allocation13], %s141
      %s144 = sshll.u32 [#allocation14], 4
      %s145 = int_to_ptr.vmem [resolvable:$true] %s144
      %147 = dma.vmem_to_hbm [thread:$0]  %s145, 256, %s8, [#allocation13]
    $region57: #{tpu_custom_call.1} parent=1 // pred_fallthru
      _
    // Predicated region
    $region58: #{tpu_custom_call.1} parent=1 // pred_check
      _
    $region59: #{tpu_custom_call.1} parent=1 // pred_check_branch
      %149 = sbr.rel (0) target = $region61
    $region60: #{tpu_custom_call.1} parent=1 // pred_region
      %150 = dma.done [#allocation4], 256
    $region61: #{tpu_custom_call.1} parent=1 // pred_fallthru
      _
    // Predicated region
    $region62: #{tpu_custom_call.1} parent=1 // pred_check
      _
    $region63: #{tpu_custom_call.1} parent=1 // pred_check_branch
      %152 = sbr.rel (0) target = $region65
    $region64: #{tpu_custom_call.1} parent=1 // pred_region
      %153 = dma.done [#allocation13], 256
    $region65: #{tpu_custom_call.1} parent=1 // pred_fallthru
      _
    // Predicated region
    $region66: #{tpu_custom_call.1} parent=1 // pred_check
      _
    $region67: #{tpu_custom_call.1} parent=1 // pred_check_branch
      %155 = sbr.rel (0) target = $region69
    $region68: #{tpu_custom_call.1} parent=1 // pred_region
      %156 = dma.done [#allocation13], 256
    $region69: #{tpu_custom_call.1} parent=1 // pred_fallthru
      _
    %157 = vsyncpa [#allocation3], 1
    %158 = vsyncpa [#allocation6], 1
    %159 = vsyncpa [#allocation9], 1
    %160 = vsyncpa [#allocation4], 1
    %161 = vsyncpa [#allocation13], 1

</llo_original>
